<compile_context>
chip_gen: v6e
topology: v6e:2x2x1
jax: 0.10.0
libtpu: 0.0.40
codegen_flags: <defaults>
</compile_context>

<pallas_src>
import math

import jax
import jax.numpy as jnp
from jax import lax
from jax.experimental import pallas as pl
from jax.experimental.pallas import tpu as pltpu

_INF = -1000.0  # matches self._inf in the PyTorch module


def _flash_step(q_ref, k_ref, v_ref, mask, o_ref, m_s, l_s, acc_s):
    """One (batch, q-tile, k-tile) step of flash-style attention (online softmax)."""
    ki = pl.program_id(2)

    @pl.when(ki == 0)
    def _():
        m_s[...] = jnp.full_like(m_s, -jnp.inf)
        l_s[...] = jnp.zeros_like(l_s)
        acc_s[...] = jnp.zeros_like(acc_s)

    q = q_ref[0]          # (tq, D)  native dtype
    k = k_ref[0]          # (tk, D)
    v = v_ref[0]          # (tk, Dv)

    # scores = q @ k^T / sqrt(D) — transpose done inside the MXU contraction.
    s = lax.dot_general(q, k, (((1,), (1,)), ((), ())),
                        preferred_element_type=jnp.float32)      # (tq, tk) f32
    s = s * (1.0 / math.sqrt(k.shape[-1]))

    if mask is not None:
        # masked_fill_(mask, -1000); mask may be (tq, tk) or (1, tk) (broadcast).
        s = jnp.where(mask != 0, _INF, s)

    # --- online softmax update ---
    m_prev = m_s[...]                                            # (tq, 1)
    m_new = jnp.maximum(m_prev, jnp.max(s, axis=-1, keepdims=True))
    alpha = jnp.exp(m_prev - m_new)
    p = jnp.exp(s - m_new)                                       # (tq, tk) f32
    l_s[...] = alpha * l_s[...] + jnp.sum(p, axis=-1, keepdims=True)
    acc_s[...] = alpha * acc_s[...] + lax.dot_general(
        p.astype(v.dtype), v, (((1,), (0,)), ((), ())),
        preferred_element_type=jnp.float32)
    m_s[...] = m_new

    @pl.when(ki == pl.num_programs(2) - 1)
    def _():
        # TODO(synk): dropout on the attention weights is identity here
        # (F.dropout with training=False semantics).
        inv_l = pl.reciprocal(l_s[...], approx=True)
        o_ref[0] = (acc_s[...] * inv_l).astype(o_ref.dtype)


def _kernel_nomask(q_ref, k_ref, v_ref, o_ref, m_s, l_s, acc_s):
    _flash_step(q_ref, k_ref, v_ref, None, o_ref, m_s, l_s, acc_s)


def _kernel_masked(q_ref, k_ref, v_ref, mask_ref, o_ref, m_s, l_s, acc_s):
    _flash_step(q_ref, k_ref, v_ref, mask_ref[0], o_ref, m_s, l_s, acc_s)


def _pick_tile(n, max_tile, align):
    """Largest multiple of `align` that divides n and is <= max_tile, else n (full)."""
    if n <= max_tile:
        return n
    t = (max_tile // align) * align
    while t >= align:
        if n % t == 0:
            return t
        t -= align
    return n


def self_attention(q, k, v, non_pad_mask=None, *, max_tq=256, max_tk=256):
    """Pallas TPU self-attention matching SelfAttention.forward (eval mode).

    q: (B, Lq, D), k: (B, Lk, D), v: (B, Lk, Dv)
    non_pad_mask: optional; nonzero positions are filled with -1000.
        Shapes: (B, Lq, Lk), (B, 1, Lk) or (B, Lk).
    returns: (B, Lq, Dv) with dtype of v.
    """
    B, Lq, D = q.shape
    _, Lk, Dk = k.shape
    Dv = v.shape[-1]

    # q tiles need sublane (8) alignment; k tiles are the scores'/mask's lane dim
    # so prefer 128-alignment. Fall back to the full length when not divisible.
    # For v7x (64 MiB VMEM) lower max_tq/max_tk if scratch + double-buffered inputs grow.
    tq = _pick_tile(Lq, max_tq, 8)
    tk = _pick_tile(Lk, max_tk, 128)
    grid = (B, Lq // tq, Lk // tk)

    q_spec = pl.BlockSpec((1, tq, D), lambda b, qi, ki: (b, qi, 0))
    k_spec = pl.BlockSpec((1, tk, Dk), lambda b, qi, ki: (b, ki, 0))
    v_spec = pl.BlockSpec((1, tk, Dv), lambda b, qi, ki: (b, ki, 0))
    out_spec = pl.BlockSpec((1, tq, Dv), lambda b, qi, ki: (b, qi, 0))

    if non_pad_mask is None:
        kernel = _kernel_nomask
        in_specs = [q_spec, k_spec, v_spec]
        args = (q, k, v)
    else:
        m = jnp.asarray(non_pad_mask)
        if m.ndim == 2:                      # (B, Lk) key-padding mask
            m = m[:, None, :]
        m = m.astype(jnp.int8)               # 4x less HBM traffic than int32
        if m.shape[1] == 1:                  # broadcast over queries in-kernel
            mask_spec = pl.BlockSpec((1, 1, tk), lambda b, qi, ki: (b, 0, ki))
        else:                                # full (B, Lq, Lk) mask
            mask_spec = pl.BlockSpec((1, tq, tk), lambda b, qi, ki: (b, qi, ki))
        kernel = _kernel_masked
        in_specs = [q_spec, k_spec, v_spec, mask_spec]
        args = (q, k, v, m)

    grid_spec = pltpu.PrefetchScalarGridSpec(
        num_scalar_prefetch=0,
        grid=grid,
        in_specs=in_specs,
        out_specs=out_spec,
        scratch_shapes=[
            pltpu.VMEM((tq, 1), jnp.float32),    # running max
            pltpu.VMEM((tq, 1), jnp.float32),    # running softmax denominator
            pltpu.VMEM((tq, Dv), jnp.float32),   # output accumulator
        ],
    )

    return pl.pallas_call(
        kernel,
        out_shape=jax.ShapeDtypeStruct((B, Lq, Dv), v.dtype),
        grid_spec=grid_spec,
        compiler_params=pltpu.CompilerParams(
            # B / q-tile axes are independent (megacore-shardable);
            # k-tile axis carries the online-softmax state.
            dimension_semantics=("parallel", "parallel", "arbitrary")),
    )(*args)


def _reference(q, k, v, non_pad_mask=None):
    d_k = k.shape[-1]
    s = jnp.einsum("bqd,bkd->bqk", q.astype(jnp.float32),
                   k.astype(jnp.float32)) / math.sqrt(d_k)
    if non_pad_mask is not None:
        m = jnp.asarray(non_pad_mask)
        if m.ndim == 2:
            m = m[:, None, :]
        s = jnp.where(m != 0, _INF, s)
    p = jax.nn.softmax(s, axis=-1)
    return jnp.einsum("bqk,bkv->bqv", p, v.astype(jnp.float32))


if __name__ == "__main__":
    key = jax.random.PRNGKey(0)

    # --- small test (module's toy shapes), f32 ---
    B, L, D = 2, 8, 32
    kq, kk, kv = jax.random.split(key, 3)
    q = jax.random.normal(kq, (B, L, D), dtype=jnp.float32)
    k = jax.random.normal(kk, (B, L, D), dtype=jnp.float32)
    v = jax.random.normal(kv, (B, L, D), dtype=jnp.float32)

    # full (B, Lq, Lk) mask: last 2 key positions of batch 1 are padding
    full_mask = jnp.zeros((B, L, L), dtype=bool).at[1, :, -2:].set(True)
    out = jax.block_until_ready(self_attention(q, k, v, full_mask))
    ref = _reference(q, k, v, full_mask)
    assert out.shape == (B, L, D)
    assert jnp.allclose(out, ref, atol=2e-3, rtol=2e-3), float(jnp.max(jnp.abs(out - ref)))

    # (B, Lk) key-padding mask (broadcast over queries inside the kernel)
    key_mask = jnp.zeros((B, L), dtype=bool).at[1, -2:].set(True)
    out2 = jax.block_until_ready(self_attention(q, k, v, key_mask))
    assert jnp.allclose(out2, ref, atol=2e-3, rtol=2e-3), float(jnp.max(jnp.abs(out2 - ref)))

    # no-mask fast path (no mask tensor is DMA'd at all)
    out3 = jax.block_until_ready(self_attention(q, k, v))
    ref3 = _reference(q, k, v)
    assert jnp.allclose(out3, ref3, atol=2e-3, rtol=2e-3), float(jnp.max(jnp.abs(out3 - ref3)))

    # --- tiled bf16 test: exercises the online-softmax path with grid (2, 2, 2) ---
    B2, L2, D2 = 2, 256, 128
    kq2, kk2, kv2 = jax.random.split(jax.random.PRNGKey(1), 3)
    q2 = jax.random.normal(kq2, (B2, L2, D2), dtype=jnp.bfloat16)
    k2 = jax.random.normal(kk2, (B2, L2, D2), dtype=jnp.bfloat16)
    v2 = jax.random.normal(kv2, (B2, L2, D2), dtype=jnp.bfloat16)
    key_mask2 = jnp.zeros((B2, L2), dtype=bool).at[:, -17:].set(True)
    out4 = jax.block_until_ready(
        self_attention(q2, k2, v2, key_mask2, max_tq=128, max_tk=128))
    ref4 = _reference(q2, k2, v2, key_mask2)
    assert jnp.allclose(out4.astype(jnp.float32), ref4, atol=2e-2, rtol=2e-2), float(
        jnp.max(jnp.abs(out4.astype(jnp.float32) - ref4)))

    print("KERNEL_OK")
</pallas_src>

<mosaic_0001>
module attributes {stable_mosaic.version = 11 : i64} {
  func.func @_kernel_masked(%arg0: i32, %arg1: i32, %arg2: i32, %arg3: memref<1x8x32xf32, #tpu.memory_space<vmem>>, %arg4: memref<1x8x32xf32, #tpu.memory_space<vmem>>, %arg5: memref<1x8x32xf32, #tpu.memory_space<vmem>>, %arg6: memref<1x8x8xi8, #tpu.memory_space<vmem>>, %arg7: memref<1x8x32xf32, #tpu.memory_space<vmem>>, %arg8: memref<8x1xf32, #tpu.memory_space<vmem>>, %arg9: memref<8x1xf32, #tpu.memory_space<vmem>>, %arg10: memref<8x32xf32, #tpu.memory_space<vmem>>) attributes {dimension_semantics = [#tpu.dimension_semantics<parallel>, #tpu.dimension_semantics<parallel>, #tpu.dimension_semantics<arbitrary>], iteration_bounds = array<i64: 2, 1, 1>, scalar_prefetch = 0 : i64, scratch_operands = 3 : i64, tpu.core_type = #tpu.core_type<tc>, window_params = [{transform_indices = @transform_0, window_bounds = array<i64: 1, 8, 32>}, {transform_indices = @transform_1, window_bounds = array<i64: 1, 8, 32>}, {transform_indices = @transform_2, window_bounds = array<i64: 1, 8, 32>}, {transform_indices = @transform_3, window_bounds = array<i64: 1, 8, 8>}, {transform_indices = @transform_4, window_bounds = array<i64: 1, 8, 32>}]} {
    %c0 = arith.constant 0 : index
    %c0_0 = arith.constant 0 : index
    %c0_1 = arith.constant 0 : index
    %0 = vector.load %arg6[%c0, %c0_0, %c0_1] : memref<1x8x8xi8, #tpu.memory_space<vmem>>, vector<1x8x8xi8>
    %1 = vector.shape_cast %0 : vector<1x8x8xi8> to vector<8x8xi8>
    %c0_i32 = arith.constant 0 : i32
    %2 = arith.cmpi eq, %arg2, %c0_i32 : i32
    %3 = arith.extui %2 : i1 to i32
    %c0_i32_2 = arith.constant 0 : i32
    %4 = arith.cmpi ne, %3, %c0_i32_2 : i32
    scf.if %4 {
      %cst_31 = arith.constant 0xFF800000 : f32
      %43 = vector.broadcast %cst_31 : f32 to vector<8x1xf32>
      %c0_32 = arith.constant 0 : index
      %c0_33 = arith.constant 0 : index
      %44 = vector.load %arg8[%c0_32, %c0_33] : memref<8x1xf32, #tpu.memory_space<vmem>>, vector<8x1xf32>
      tpu.vector_store %arg8[%c0_32, %c0_33], %43 {strides = array<i32>} : memref<8x1xf32, #tpu.memory_space<vmem>>, vector<8x1xf32>,
      %cst_34 = arith.constant 0.000000e+00 : f32
      %45 = vector.broadcast %cst_34 : f32 to vector<8x1xf32>
      %c0_35 = arith.constant 0 : index
      %c0_36 = arith.constant 0 : index
      %46 = vector.load %arg9[%c0_35, %c0_36] : memref<8x1xf32, #tpu.memory_space<vmem>>, vector<8x1xf32>
      tpu.vector_store %arg9[%c0_35, %c0_36], %45 {strides = array<i32>} : memref<8x1xf32, #tpu.memory_space<vmem>>, vector<8x1xf32>,
      %cst_37 = arith.constant 0.000000e+00 : f32
      %47 = vector.broadcast %cst_37 : f32 to vector<8x32xf32>
      %c0_38 = arith.constant 0 : index
      %c0_39 = arith.constant 0 : index
      %48 = vector.load %arg10[%c0_38, %c0_39] : memref<8x32xf32, #tpu.memory_space<vmem>>, vector<8x32xf32>
      tpu.vector_store %arg10[%c0_38, %c0_39], %47 {strides = array<i32>} : memref<8x32xf32, #tpu.memory_space<vmem>>, vector<8x32xf32>,
    } else {
    }
    %c0_3 = arith.constant 0 : index
    %c0_4 = arith.constant 0 : index
    %c0_5 = arith.constant 0 : index
    %5 = vector.load %arg3[%c0_3, %c0_4, %c0_5] : memref<1x8x32xf32, #tpu.memory_space<vmem>>, vector<1x8x32xf32>
    %6 = vector.shape_cast %5 : vector<1x8x32xf32> to vector<8x32xf32>
    %c0_6 = arith.constant 0 : index
    %c0_7 = arith.constant 0 : index
    %c0_8 = arith.constant 0 : index
    %7 = vector.load %arg4[%c0_6, %c0_7, %c0_8] : memref<1x8x32xf32, #tpu.memory_space<vmem>>, vector<1x8x32xf32>
    %8 = vector.shape_cast %7 : vector<1x8x32xf32> to vector<8x32xf32>
    %c0_9 = arith.constant 0 : index
    %c0_10 = arith.constant 0 : index
    %c0_11 = arith.constant 0 : index
    %9 = vector.load %arg5[%c0_9, %c0_10, %c0_11] : memref<1x8x32xf32, #tpu.memory_space<vmem>>, vector<1x8x32xf32>
    %10 = vector.shape_cast %9 : vector<1x8x32xf32> to vector<8x32xf32>
    %cst = arith.constant dense<0.000000e+00> : vector<8x8xf32>
    %11 = tpu.matmul %6, %8, %cst {dimension_numbers = #tpu.dot_dimension_numbers<[1], [1], [0], [0], [0, 0, 1, 0], [], []>} : vector<8x32xf32>, vector<8x32xf32>, vector<8x8xf32> -> vector<8x8xf32>
    %cst_12 = arith.constant 0.176776692 : f32
    %12 = vector.broadcast %cst_12 : f32 to vector<8x8xf32>
    %13 = arith.mulf %11, %12 : vector<8x8xf32>
    %c0_i8 = arith.constant 0 : i8
    %14 = vector.broadcast %c0_i8 : i8 to vector<8x8xi8>
    %15 = arith.cmpi ne, %1, %14 : vector<8x8xi8>
    %cst_13 = arith.constant -1.000000e+03 : f32
    %16 = vector.broadcast %cst_13 : f32 to vector<8x8xf32>
    %17 = arith.select %15, %16, %13 : vector<8x8xi1>, vector<8x8xf32>
    %c0_14 = arith.constant 0 : index
    %c0_15 = arith.constant 0 : index
    %18 = vector.load %arg8[%c0_14, %c0_15] : memref<8x1xf32, #tpu.memory_space<vmem>>, vector<8x1xf32>
    %cst_16 = arith.constant dense<0xFF800000> : vector<8xf32>
    %19 = vector.multi_reduction <maximumf>, %17, %cst_16 [1] : vector<8x8xf32> to vector<8xf32>
    %20 = vector.shape_cast %19 : vector<8xf32> to vector<8x1xf32>
    %21 = arith.maximumf %18, %20 : vector<8x1xf32>
    %22 = arith.subf %18, %21 : vector<8x1xf32>
    %23 = math.exp %22 : vector<8x1xf32>
    %24 = vector.broadcast %21 : vector<8x1xf32> to vector<8x8xf32>
    %25 = arith.subf %17, %24 : vector<8x8xf32>
    %26 = math.exp %25 : vector<8x8xf32>
    %c0_17 = arith.constant 0 : index
    %c0_18 = arith.constant 0 : index
    %27 = vector.load %arg9[%c0_17, %c0_18] : memref<8x1xf32, #tpu.memory_space<vmem>>, vector<8x1xf32>
    %28 = arith.mulf %23, %27 : vector<8x1xf32>
    %cst_19 = arith.constant dense<0.000000e+00> : vector<8xf32>
    %29 = vector.multi_reduction <add>, %26, %cst_19 [1] : vector<8x8xf32> to vector<8xf32>
    %30 = vector.shape_cast %29 : vector<8xf32> to vector<8x1xf32>
    %31 = arith.addf %28, %30 : vector<8x1xf32>
    %c0_20 = arith.constant 0 : index
    %c0_21 = arith.constant 0 : index
    %32 = vector.load %arg9[%c0_20, %c0_21] : memref<8x1xf32, #tpu.memory_space<vmem>>, vector<8x1xf32>
    tpu.vector_store %arg9[%c0_20, %c0_21], %31 {strides = array<i32>} : memref<8x1xf32, #tpu.memory_space<vmem>>, vector<8x1xf32>,
    %c0_22 = arith.constant 0 : index
    %c0_23 = arith.constant 0 : index
    %33 = vector.load %arg10[%c0_22, %c0_23] : memref<8x32xf32, #tpu.memory_space<vmem>>, vector<8x32xf32>
    %34 = vector.broadcast %23 : vector<8x1xf32> to vector<8x32xf32>
    %35 = arith.mulf %34, %33 : vector<8x32xf32>
    %cst_24 = arith.constant dense<0.000000e+00> : vector<8x32xf32>
    %36 = tpu.matmul %26, %10, %cst_24 {dimension_numbers = #tpu.dot_dimension_numbers<[1], [0], [0], [1], [0, 0, 1, 1], [], []>} : vector<8x8xf32>, vector<8x32xf32>, vector<8x32xf32> -> vector<8x32xf32>
    %37 = arith.addf %35, %36 : vector<8x32xf32>
    %c0_25 = arith.constant 0 : index
    %c0_26 = arith.constant 0 : index
    %38 = vector.load %arg10[%c0_25, %c0_26] : memref<8x32xf32, #tpu.memory_space<vmem>>, vector<8x32xf32>
    tpu.vector_store %arg10[%c0_25, %c0_26], %37 {strides = array<i32>} : memref<8x32xf32, #tpu.memory_space<vmem>>, vector<8x32xf32>,
    %c0_27 = arith.constant 0 : index
    %c0_28 = arith.constant 0 : index
    %39 = vector.load %arg8[%c0_27, %c0_28] : memref<8x1xf32, #tpu.memory_space<vmem>>, vector<8x1xf32>
    tpu.vector_store %arg8[%c0_27, %c0_28], %21 {strides = array<i32>} : memref<8x1xf32, #tpu.memory_space<vmem>>, vector<8x1xf32>,
    %c0_i32_29 = arith.constant 0 : i32
    %40 = arith.cmpi eq, %arg2, %c0_i32_29 : i32
    %41 = arith.extui %40 : i1 to i32
    %c0_i32_30 = arith.constant 0 : i32
    %42 = arith.cmpi ne, %41, %c0_i32_30 : i32
    scf.if %42 {
      %c0_31 = arith.constant 0 : index
      %c0_32 = arith.constant 0 : index
      %43 = vector.load %arg9[%c0_31, %c0_32] : memref<8x1xf32, #tpu.memory_space<vmem>>, vector<8x1xf32>
      %44 = tpu.reciprocal %43 {approx = true} : vector<8x1xf32> -> vector<8x1xf32>
      %c0_33 = arith.constant 0 : index
      %c0_34 = arith.constant 0 : index
      %45 = vector.load %arg10[%c0_33, %c0_34] : memref<8x32xf32, #tpu.memory_space<vmem>>, vector<8x32xf32>
      %46 = vector.broadcast %44 : vector<8x1xf32> to vector<8x32xf32>
      %47 = arith.mulf %45, %46 : vector<8x32xf32>
      %c0_35 = arith.constant 0 : index
      %c0_36 = arith.constant 0 : index
      %c0_37 = arith.constant 0 : index
      %48 = vector.load %arg7[%c0_35, %c0_36, %c0_37] : memref<1x8x32xf32, #tpu.memory_space<vmem>>, vector<1x8x32xf32>
      %49 = vector.shape_cast %48 : vector<1x8x32xf32> to vector<8x32xf32>
      %50 = vector.shape_cast %47 : vector<8x32xf32> to vector<1x8x32xf32>
      tpu.vector_store %arg7[%c0_35, %c0_36, %c0_37], %50 {strides = array<i32>} : memref<1x8x32xf32, #tpu.memory_space<vmem>>, vector<1x8x32xf32>,
    } else {
    }
    return
  }
  func.func @transform_0(%arg0: i32, %arg1: i32, %arg2: i32) -> (i32, i32, i32) {
    %c0_i32 = arith.constant 0 : i32
    %c0_i32_0 = arith.constant 0 : i32
    return %arg0, %arg1, %c0_i32 : i32, i32, i32
  }
  func.func @transform_1(%arg0: i32, %arg1: i32, %arg2: i32) -> (i32, i32, i32) {
    %c0_i32 = arith.constant 0 : i32
    %c0_i32_0 = arith.constant 0 : i32
    return %arg0, %arg2, %c0_i32 : i32, i32, i32
  }
  func.func @transform_2(%arg0: i32, %arg1: i32, %arg2: i32) -> (i32, i32, i32) {
    %c0_i32 = arith.constant 0 : i32
    %c0_i32_0 = arith.constant 0 : i32
    return %arg0, %arg2, %c0_i32 : i32, i32, i32
  }
  func.func @transform_3(%arg0: i32, %arg1: i32, %arg2: i32) -> (i32, i32, i32) {
    %c0_i32 = arith.constant 0 : i32
    return %arg0, %arg1, %arg2 : i32, i32, i32
  }
  func.func @transform_4(%arg0: i32, %arg1: i32, %arg2: i32) -> (i32, i32, i32) {
    %c0_i32 = arith.constant 0 : i32
    %c0_i32_0 = arith.constant 0 : i32
    return %arg0, %arg1, %c0_i32 : i32, i32, i32
  }
}

</mosaic_0001>

<llo_original>
// kernel: tpu_custom_call.1
$region0: #{tpu_custom_call.1}
  #allocation0 [shape = 'u32[]', space=smem, size = 0x4, offset = 0x4, fixed_abs, tag = 'smem constant byte address 0x4 - core index']
  #allocation1 [shape = 'u32[144,128]{1,0:T(1,128)}', space=vmem, size = 0x12000, scoped, tag = 'internal scratch']
  #allocation2 [shape = 'f32[8,1]{1,0:T(8,128)}', space=vmem, size = 0x1000, scoped, tag = 'scratch operand']
  #allocation3 [shape = 'f32[8,1]{1,0:T(8,128)}', space=vmem, size = 0x1000, scoped, tag = 'scratch operand']
  #allocation4 [shape = 'f32[8,32]{1,0:T(8,128)}', space=vmem, size = 0x1000, scoped, tag = 'scratch operand']
  %s0 = inlined_call_operand.hbm [shape: f32[2,8,32], index: 0, kind: input, shape index: {}]
  %s1 = inlined_call_operand.hbm [shape: f32[2,8,32], index: 1, kind: input, shape index: {}]
  %s2 = inlined_call_operand.hbm [shape: f32[2,8,32], index: 2, kind: input, shape index: {}]
  %s3 = inlined_call_operand.vmem [shape: s8[2,8,8], index: 3, kind: input, shape index: {}]
  %s4 = inlined_call_operand.hbm [shape: f32[2,8,32], index: 4, kind: output, shape index: {}]
  %s5 = sld [smem:[#allocation0]]
  $region69: #{tpu_custom_call.1} parent=0
    _
  %s7 = ssub.s32 1, %s5
  %s8 = scalar_select 0, %s7, %s5
  $region1: #{tpu_custom_call.1} parent=0
    #allocation5 [shape = 'u8[8192]{0}', space=vmem, size = 0x2000, scoped, tag = 'input window, operand 0']
    #allocation6 [shape = 's32[2]{0}', space=sflag, size = 0x8, scoped, tag = 'scoped memory for tpu_custom_call.1']
    #allocation7 [shape = 's32[2]{0}', space=sflag, size = 0x8, scoped, tag = 'scoped memory for tpu_custom_call.1']
    #allocation8 [shape = 'u8[8192]{0}', space=vmem, size = 0x2000, scoped, tag = 'input window, operand 1']
    #allocation9 [shape = 's32[2]{0}', space=sflag, size = 0x8, scoped, tag = 'scoped memory for tpu_custom_call.1']
    #allocation10 [shape = 'u8[8192]{0}', space=vmem, size = 0x2000, scoped, tag = 'input window, operand 2']
    #allocation11 [shape = 'u8[8192]{0}', space=vmem, size = 0x2000, scoped, tag = 'output window, operand 0']
    %9 = vsyncpa [#allocation6], 0
    %s10 = scalar_lea.sflag [#allocation6], 1
    %11 = vsyncpa %s10, 0
    %12 = vsyncpa [#allocation9], 0
    %s13 = scalar_lea.sflag [#allocation9], 1
    %14 = vsyncpa %s13, 0
    %15 = vsyncpa [#allocation7], 0
    %s16 = scalar_lea.sflag [#allocation7], 1
    %17 = vsyncpa %s16, 0
    loop: start=0, step=1, limit=4
    $region2: #{tpu_custom_call.1} parent=1 // loop_pre_header
      _
    $region3: #{tpu_custom_call.1} parent=1 // loop_header
      %s19 = sphi 0, %s23
      %p20 = scmp.ge.s32.totalorder %s19, 4
      %s26 = sphi 0, %s45
      %s27 = sphi 0, %s41
      %s28 = sphi 0, %s37
      %s29 = sphi 0, %s26
      %s30 = sphi 0, %s27
      %s31 = sphi 0, %s28
      %s32 = sphi 0, %s29
      %s33 = sphi 0, %s30
      %s34 = sphi 0, %s31
      %s50 = sphi 0, %s52
      %s53 = sphi 0, %s50
      %s54 = sphi 0, %s53
      %s70 = sphi 0, %s54
      %s78 = sphi 0, %s80
      %s81 = sphi 0, %s78
      %s82 = sphi 0, %s81
      %s98 = sphi 0, %s82
      %s106 = sphi 0, %s108
      %s109 = sphi 0, %s106
      %s110 = sphi 0, %s109
      %s126 = sphi 0, %s110
      %s136 = sphi 0, %s138
      %s139 = sphi 0, %s136
      %s140 = sphi 0, %s139
      %s156 = sphi 0, %s140
      %s164 = sphi 0, %s166
      %s167 = sphi 0, %s164
      %s168 = sphi 0, %s167
      %s184 = sphi 0, %s168
    $region4: #{tpu_custom_call.1} parent=1 // loop_header_branch
      %22 = sbr.rel (%p20) target = $region8
    $region5: #{tpu_custom_call.1} parent=1 // loop_body
      %s24 = ssub.s32 %s19, 1
      %s25 = ssub.s32 %s19, 2
      %s35 = sadd.s32 1, %s28
      %p36 = scmp.ge.s32.totalorder %s35, 1
      %s37 = scalar_select %p36, 0, %s35
      %s38 = sadd.s32 1, %s27
      %s39 = scalar_select %p36, %s38, %s27
      %p40 = scmp.ge.s32.totalorder %s39, 1
      %s41 = scalar_select %p40, 0, %s39
      %s42 = sadd.s32 1, %s26
      %s43 = scalar_select %p40, %s42, %s26
      %p44 = scmp.ge.s32.totalorder %s43, 2
      %s45 = scalar_select %p44, 0, %s43
      %s46 = ssub.s32 %s26, %s45
      %s47 = ssub.s32 %s27, %s41
      %s48 = sor.u32 %s46, %s47
      %p49 = scmp.eq.s32.totalorder %s48, 0
      %s51 = sadd.s32 %s50, 1
      %s52 = scalar_select %p49, %s50, %s51
      %p55 = pneg %p49
      %p56 = scmp.eq.s32.totalorder %s19, 1
      %p57 = por %p55, %p56
      %p58 = scmp.ne.s32.totalorder %s50, %s53
      %p59 = scmp.eq.s32.totalorder %s19, 0
      %p60 = por %p58, %p59
      %p61 = scmp.ne.s32.totalorder %s50, %s53
      %p62 = scmp.eq.s32.totalorder %s24, 1
      %p63 = por %p61, %p62
      %p64 = scmp.ne.s32.totalorder %s53, %s54
      %p65 = scmp.eq.s32.totalorder %s24, 0
      %p66 = por %p64, %p65
      %p67 = scmp.ne.s32.totalorder %s53, %s54
      %p68 = scmp.eq.s32.totalorder %s25, 1
      %p69 = por %p67, %p68
      %p71 = scmp.ne.s32.totalorder %s54, %s70
      %p72 = scmp.eq.s32.totalorder %s25, 0
      %p73 = por %p71, %p72
      %s74 = ssub.s32 %s26, %s45
      %s75 = ssub.s32 %s28, %s37
      %s76 = sor.u32 %s74, %s75
      %p77 = scmp.eq.s32.totalorder %s76, 0
      %s79 = sadd.s32 %s78, 1
      %s80 = scalar_select %p77, %s78, %s79
      %p83 = pneg %p77
      %p84 = scmp.eq.s32.totalorder %s19, 1
      %p85 = por %p83, %p84
      %p86 = scmp.ne.s32.totalorder %s78, %s81
      %p87 = scmp.eq.s32.totalorder %s19, 0
      %p88 = por %p86, %p87
      %p89 = scmp.ne.s32.totalorder %s78, %s81
      %p90 = scmp.eq.s32.totalorder %s24, 1
      %p91 = por %p89, %p90
      %p92 = scmp.ne.s32.totalorder %s81, %s82
      %p93 = scmp.eq.s32.totalorder %s24, 0
      %p94 = por %p92, %p93
      %p95 = scmp.ne.s32.totalorder %s81, %s82
      %p96 = scmp.eq.s32.totalorder %s25, 1
      %p97 = por %p95, %p96
      %p99 = scmp.ne.s32.totalorder %s82, %s98
      %p100 = scmp.eq.s32.totalorder %s25, 0
      %p101 = por %p99, %p100
      %s102 = ssub.s32 %s26, %s45
      %s103 = ssub.s32 %s28, %s37
      %s104 = sor.u32 %s102, %s103
      %p105 = scmp.eq.s32.totalorder %s104, 0
      %s107 = sadd.s32 %s106, 1
      %s108 = scalar_select %p105, %s106, %s107
      %p111 = pneg %p105
      %p112 = scmp.eq.s32.totalorder %s19, 1
      %p113 = por %p111, %p112
      %p114 = scmp.ne.s32.totalorder %s106, %s109
      %p115 = scmp.eq.s32.totalorder %s19, 0
      %p116 = por %p114, %p115
      %p117 = scmp.ne.s32.totalorder %s106, %s109
      %p118 = scmp.eq.s32.totalorder %s24, 1
      %p119 = por %p117, %p118
      %p120 = scmp.ne.s32.totalorder %s109, %s110
      %p121 = scmp.eq.s32.totalorder %s24, 0
      %p122 = por %p120, %p121
      %p123 = scmp.ne.s32.totalorder %s109, %s110
      %p124 = scmp.eq.s32.totalorder %s25, 1
      %p125 = por %p123, %p124
      %p127 = scmp.ne.s32.totalorder %s110, %s126
      %p128 = scmp.eq.s32.totalorder %s25, 0
      %p129 = por %p127, %p128
      %s130 = ssub.s32 %s26, %s45
      %s131 = ssub.s32 %s27, %s41
      %s132 = sor.u32 %s130, %s131
      %s133 = ssub.s32 %s28, %s37
      %s134 = sor.u32 %s132, %s133
      %p135 = scmp.eq.s32.totalorder %s134, 0
      %s137 = sadd.s32 %s136, 1
      %s138 = scalar_select %p135, %s136, %s137
      %p141 = pneg %p135
      %p142 = scmp.eq.s32.totalorder %s19, 1
      %p143 = por %p141, %p142
      %p144 = scmp.ne.s32.totalorder %s136, %s139
      %p145 = scmp.eq.s32.totalorder %s19, 0
      %p146 = por %p144, %p145
      %p147 = scmp.ne.s32.totalorder %s136, %s139
      %p148 = scmp.eq.s32.totalorder %s24, 1
      %p149 = por %p147, %p148
      %p150 = scmp.ne.s32.totalorder %s139, %s140
      %p151 = scmp.eq.s32.totalorder %s24, 0
      %p152 = por %p150, %p151
      %p153 = scmp.ne.s32.totalorder %s139, %s140
      %p154 = scmp.eq.s32.totalorder %s25, 1
      %p155 = por %p153, %p154
      %p157 = scmp.ne.s32.totalorder %s140, %s156
      %p158 = scmp.eq.s32.totalorder %s25, 0
      %p159 = por %p157, %p158
      %s160 = ssub.s32 %s26, %s45
      %s161 = ssub.s32 %s27, %s41
      %s162 = sor.u32 %s160, %s161
      %p163 = scmp.eq.s32.totalorder %s162, 0
      %s165 = sadd.s32 %s164, 1
      %s166 = scalar_select %p163, %s164, %s165
      %p169 = pneg %p163
      %p170 = scmp.eq.s32.totalorder %s19, 1
      %p171 = por %p169, %p170
      %p172 = scmp.ne.s32.totalorder %s164, %s167
      %p173 = scmp.eq.s32.totalorder %s19, 0
      %p174 = por %p172, %p173
      %p175 = scmp.ne.s32.totalorder %s164, %s167
      %p176 = scmp.eq.s32.totalorder %s24, 1
      %p177 = por %p175, %p176
      %p178 = scmp.ne.s32.totalorder %s167, %s168
      %p179 = scmp.eq.s32.totalorder %s24, 0
      %p180 = por %p178, %p179
      %p181 = scmp.ne.s32.totalorder %s167, %s168
      %p182 = scmp.eq.s32.totalorder %s25, 1
      %p183 = por %p181, %p182
      %p185 = scmp.ne.s32.totalorder %s168, %s184
      %p186 = scmp.eq.s32.totalorder %s25, 0
      %p187 = por %p185, %p186
      %p188 = scmp.le.s32.totalorder 1, %s19
      %p189 = scmp.lt.s32.totalorder %s19, 3
      %p190 = pnand %p188, %p189
      %p191 = pneg %p190
      // Predicated region
      $region9: #{tpu_custom_call.1} parent=5 // pred_check
        _
      $region10: #{tpu_custom_call.1} parent=5 // pred_check_branch
        %193 = sbr.rel (%p190) target = $region12
      $region11: #{tpu_custom_call.1} parent=5 // pred_region
        %s194 = ssub.s32 %s19, 1
      $region12: #{tpu_custom_call.1} parent=5 // pred_fallthru
        _
      %p195 = scmp.lt.s32.totalorder %s19, 2
      // Predicated region
      $region13: #{tpu_custom_call.1} parent=5 // pred_check
        %p196 = pneg %p195
      $region14: #{tpu_custom_call.1} parent=5 // pred_check_branch
        %198 = sbr.rel (%p196) target = $region16
      $region15: #{tpu_custom_call.1} parent=5 // pred_region
        // Predicated region
        $region17: #{tpu_custom_call.1} parent=15 // pred_check
          %p199 = pneg %p60
        $region18: #{tpu_custom_call.1} parent=15 // pred_check_branch
          %201 = sbr.rel (%p199) target = $region20
        $region19: #{tpu_custom_call.1} parent=15 // pred_region
          %s202 = sand.u32 %s50, 1
          %s203 = scalar_lea.sflag [#allocation6], %s202
          %s204 = sand.u32 %s50, 1
          %s205 = smul.addr %s204, 8
          %s206 = scalar_lea.vmem [#allocation5], %s205
          %s208 = ssub.s32 128, 128
          %209 = vsyncadd %s203, %s208
          %s210 = sadd.s32 %s27, %s26
          %s211 = smul.addr %s210, 128
          %s212 = scalar_lea.hbm %s0, %s211
          %s214 = sshll.u32 %s206, 4
          %s215 = int_to_ptr.vmem [resolvable:$true] %s214
          %217 = dma.hbm_to_vmem [thread:$0]  %s212, 128, %s215, %s203
        $region20: #{tpu_custom_call.1} parent=15 // pred_fallthru
          _
        // Predicated region
        $region21: #{tpu_custom_call.1} parent=15 // pred_check
          %p218 = pneg %p88
        $region22: #{tpu_custom_call.1} parent=15 // pred_check_branch
          %220 = sbr.rel (%p218) target = $region24
        $region23: #{tpu_custom_call.1} parent=15 // pred_region
          %s221 = sand.u32 %s19, 1
          %s222 = scalar_lea.sflag [#allocation9], %s221
          %s223 = sand.u32 %s78, 1
          %s224 = smul.addr %s223, 8
          %s225 = scalar_lea.vmem [#allocation8], %s224
          %s227 = ssub.s32 128, 128
          %228 = vsyncadd %s222, %s227
          %s229 = sadd.s32 %s28, %s26
          %s230 = smul.addr %s229, 128
          %s231 = scalar_lea.hbm %s1, %s230
          %s233 = sshll.u32 %s225, 4
          %s234 = int_to_ptr.vmem [resolvable:$true] %s233
          %236 = dma.hbm_to_vmem [thread:$0]  %s231, 128, %s234, %s222
        $region24: #{tpu_custom_call.1} parent=15 // pred_fallthru
          _
        // Predicated region
        $region25: #{tpu_custom_call.1} parent=15 // pred_check
          %p237 = pneg %p116
        $region26: #{tpu_custom_call.1} parent=15 // pred_check_branch
          %239 = sbr.rel (%p237) target = $region28
        $region27: #{tpu_custom_call.1} parent=15 // pred_region
          %s240 = sand.u32 %s19, 1
          %s241 = scalar_lea.sflag [#allocation9], %s240
          %s242 = sand.u32 %s106, 1
          %s243 = smul.addr %s242, 8
          %s244 = scalar_lea.vmem [#allocation10], %s243
          %s246 = ssub.s32 128, 128
          %247 = vsyncadd %s241, %s246
          %s248 = sadd.s32 %s28, %s26
          %s249 = smul.addr %s248, 128
          %s250 = scalar_lea.hbm %s2, %s249
          %s252 = sshll.u32 %s244, 4
          %s253 = int_to_ptr.vmem [resolvable:$true] %s252
          %255 = dma.hbm_to_vmem [thread:$0]  %s250, 128, %s253, %s241
        $region28: #{tpu_custom_call.1} parent=15 // pred_fallthru
          _
        // Predicated region
        $region29: #{tpu_custom_call.1} parent=15 // pred_check
          %p256 = pneg %p146
        $region30: #{tpu_custom_call.1} parent=15 // pred_check_branch
          %258 = sbr.rel (%p256) target = $region32
        $region31: #{tpu_custom_call.1} parent=15 // pred_region
          %p259 = scmp.lt.s32.totalorder %s26, 1
          %s260 = scalar_select %p259, %s26, 1
          %p261 = scmp.lt.s32.totalorder %s27, 0
          %s262 = scalar_select %p261, %s27, 0
          %p263 = scmp.lt.s32.totalorder %s28, 0
          %s264 = scalar_select %p263, %s28, 0
          %s265 = sadd.s32 %s264, %s262
          %s266 = sadd.s32 %s265, %s260
          %s267 = smul.addr %s266, 2
          %s268 = scalar_lea.vmem %s3, %s267
        $region32: #{tpu_custom_call.1} parent=15 // pred_fallthru
          _
      $region16: #{tpu_custom_call.1} parent=5 // pred_fallthru
        _
      %p269 = scmp.le.s32.totalorder 1, %s19
      %p270 = scmp.lt.s32.totalorder %s19, 3
      %p271 = pnand %p269, %p270
      %p272 = pneg %p271
      // Predicated region
      $region33: #{tpu_custom_call.1} parent=5 // pred_check
        _
      $region34: #{tpu_custom_call.1} parent=5 // pred_check_branch
        %274 = sbr.rel (%p271) target = $region36
      $region35: #{tpu_custom_call.1} parent=5 // pred_region
        %s275 = ssub.s32 %s19, 1
        %s276 = sand.u32 %s53, 1
        %s277 = scalar_lea.sflag [#allocation6], %s276
        %s278 = sand.u32 %s53, 1
        %s279 = smul.addr %s278, 8
        %s280 = scalar_lea.vmem [#allocation5], %s279
        // Predicated region
        $region37: #{tpu_custom_call.1} parent=35 // pred_check
          %p281 = pneg %p66
        $region38: #{tpu_custom_call.1} parent=35 // pred_check_branch
          %283 = sbr.rel (%p281) target = $region40
        $region39: #{tpu_custom_call.1} parent=35 // pred_region
          %284 = dma.done %s277, 128
        $region40: #{tpu_custom_call.1} parent=35 // pred_fallthru
          _
        %s285 = sand.u32 %s24, 1
        %s286 = scalar_lea.sflag [#allocation9], %s285
        %s287 = sand.u32 %s81, 1
        %s288 = smul.addr %s287, 8
        %s289 = scalar_lea.vmem [#allocation8], %s288
        // Predicated region
        $region41: #{tpu_custom_call.1} parent=35 // pred_check
          %p290 = pneg %p94
        $region42: #{tpu_custom_call.1} parent=35 // pred_check_branch
          %292 = sbr.rel (%p290) target = $region44
        $region43: #{tpu_custom_call.1} parent=35 // pred_region
          %293 = dma.done %s286, 128
        $region44: #{tpu_custom_call.1} parent=35 // pred_fallthru
          _
        %s294 = sand.u32 %s24, 1
        %s295 = scalar_lea.sflag [#allocation9], %s294
        %s296 = sand.u32 %s109, 1
        %s297 = smul.addr %s296, 8
        %s298 = scalar_lea.vmem [#allocation10], %s297
        // Predicated region
        $region45: #{tpu_custom_call.1} parent=35 // pred_check
          %p299 = pneg %p122
        $region46: #{tpu_custom_call.1} parent=35 // pred_check_branch
          %301 = sbr.rel (%p299) target = $region48
        $region47: #{tpu_custom_call.1} parent=35 // pred_region
          %302 = dma.done %s295, 128
        $region48: #{tpu_custom_call.1} parent=35 // pred_fallthru
          _
        %s303 = sand.u32 %s53, 1
        %s304 = scalar_lea.sflag [#allocation6], %s303
        %s305 = sand.u32 %s53, 1
        %s306 = smul.addr %s305, 8
        %s307 = scalar_lea.vmem [#allocation5], %s306
        %p308 = pneg %p66
        %p309 = pneg %p63
        %s310 = sand.u32 %s24, 1
        %s311 = scalar_lea.sflag [#allocation9], %s310
        %s312 = sand.u32 %s81, 1
        %s313 = smul.addr %s312, 8
        %s314 = scalar_lea.vmem [#allocation8], %s313
        %p315 = pneg %p94
        %p316 = pneg %p91
        %s317 = sand.u32 %s24, 1
        %s318 = scalar_lea.sflag [#allocation9], %s317
        %s319 = sand.u32 %s109, 1
        %s320 = smul.addr %s319, 8
        %s321 = scalar_lea.vmem [#allocation10], %s320
        %p322 = pneg %p122
        %p323 = pneg %p119
        %p324 = scmp.lt.s32.totalorder %s29, 1
        %s325 = scalar_select %p324, %s29, 1
        %p326 = scmp.lt.s32.totalorder %s30, 0
        %s327 = scalar_select %p326, %s30, 0
        %p328 = scmp.lt.s32.totalorder %s31, 0
        %s329 = scalar_select %p328, %s31, 0
        %s330 = sadd.s32 %s329, %s327
        %s331 = sadd.s32 %s330, %s325
        %s332 = smul.addr %s331, 2
        %s333 = scalar_lea.vmem %s3, %s332
        %p334 = pneg %p152
        %p335 = pneg %p149
        %p336 = pneg %p180
        %p337 = pneg %p177
        %s338 = sand.u32 %s167, 1
        %s339 = scalar_lea.sflag [#allocation7], %s338
        %s340 = sand.u32 %s167, 1
        %s341 = smul.addr %s340, 8
        %s342 = scalar_lea.vmem [#allocation11], %s341
        %p343 = scmp.lt.s32.totalorder %s29, 1
        %s344 = scalar_select %p343, %s29, 1
        %p345 = scmp.lt.s32.totalorder %s30, 0
        %s346 = scalar_select %p345, %s30, 0
        %p347 = scmp.lt.s32.totalorder %s31, 0
        %s348 = scalar_select %p347, %s31, 0
        %s349 = sadd.s32 %s348, %s346
        %s350 = sadd.s32 %s349, %s344
        %s351 = smul.addr %s350, 2
        %s352 = scalar_lea.vmem %s3, %s351
        %v355 = vld [vmem:[%s352] sm:$0x3]
        %p356 = scmp.eq.s32.totalorder %s31, 0
        // Predicated region
        $region49: #{tpu_custom_call.1} parent=35 // pred_check
          %p357 = pneg %p356
        $region50: #{tpu_custom_call.1} parent=35 // pred_check_branch
          %359 = sbr.rel (%p357) target = $region52
        $region51: #{tpu_custom_call.1} parent=35 // pred_region
          %vm360 = vcmask 7168
          %361 = vst.msk [vmem:[#allocation2] sm:$0xff] %vm360, -inf
          %362 = vst.msk [vmem:[#allocation3] sm:$0xff] %vm360, 0.0
          %vm363 = vcmask 261120
          %364 = vst.msk [vmem:[#allocation4] sm:$0xff] %vm363, 0.0
        $region52: #{tpu_custom_call.1} parent=35 // pred_fallthru
          _
        %v365 = vld [vmem:[%s280] sm:$0xff]
        %v366 = vld [vmem:[%s289] sm:$0xff]
        %v367 = vld [vmem:[%s298] sm:$0xff]
        %vm368 = vcmask 261120
        %v370 = vsel %vm368, %v365, 0
        %v373 = vsel %vm368, %v366, 0
        %375 = vmatprep.subr.mxu0 0.0
        %376 = vmatpush1.xpose.msra.mxu0 0.0
        %377 = vmatprep.subr.mxu0 0.0
        %378 = vmatpush1.xpose.msra.mxu0 0.0
        %379 = vmatprep.subr.mxu0 0.0
        %380 = vmatpush1.xpose.msra.mxu0 0.0
        %381 = vmatprep.subr.mxu0 0.0
        %382 = vmatpush1.xpose.msra.mxu0 0.0
        %383 = vmatprep.subr.mxu0 0.0
        %384 = vmatpush1.xpose.msra.mxu0 0.0
        %385 = vmatprep.subr.mxu0 0.0
        %386 = vmatpush1.xpose.msra.mxu0 0.0
        %387 = vmatprep.subr.mxu0 0.0
        %388 = vmatpush1.xpose.msra.mxu0 0.0
        %389 = vmatprep.subr.mxu0 0.0
        %390 = vmatpush1.xpose.msra.mxu0 0.0
        %391 = vmatprep.subr.mxu0 0.0
        %392 = vmatpush1.xpose.msra.mxu0 0.0
        %393 = vmatprep.subr.mxu0 0.0
        %394 = vmatpush1.xpose.msra.mxu0 0.0
        %395 = vmatprep.subr.mxu0 0.0
        %396 = vmatpush1.xpose.msra.mxu0 0.0
        %397 = vmatprep.subr.mxu0 0.0
        %398 = vmatpush1.xpose.msra.mxu0 0.0
        %399 = vmatprep.subr.mxu0 0.0
        %400 = vmatpush1.xpose.msra.mxu0 0.0
        %401 = vmatprep.subr.mxu0 0.0
        %402 = vmatpush1.xpose.msra.mxu0 0.0
        %403 = vmatprep.subr.mxu0 0.0
        %404 = vmatpush1.xpose.msra.mxu0 0.0
        %405 = vmatprep.subr.mxu0 0.0
        %406 = vmatpush1.xpose.msra.mxu0 %v373
        %407 = vmatprep.subr.mxu0 0.0
        %408 = vmatpush2.xpose.msra.mxu0 0.0
        %409 = vmatprep.subr.mxu0 0.0
        %410 = vmatpush2.xpose.msra.mxu0 0.0
        %411 = vmatprep.subr.mxu0 0.0
        %412 = vmatpush2.xpose.msra.mxu0 0.0
        %413 = vmatprep.subr.mxu0 0.0
        %414 = vmatpush2.xpose.msra.mxu0 0.0
        %415 = vmatprep.subr.mxu0 0.0
        %416 = vmatpush2.xpose.msra.mxu0 0.0
        %417 = vmatprep.subr.mxu0 0.0
        %418 = vmatpush2.xpose.msra.mxu0 0.0
        %419 = vmatprep.subr.mxu0 0.0
        %420 = vmatpush2.xpose.msra.mxu0 0.0
        %421 = vmatprep.subr.mxu0 0.0
        %422 = vmatpush2.xpose.msra.mxu0 0.0
        %423 = vmatprep.subr.mxu0 0.0
        %424 = vmatpush2.xpose.msra.mxu0 0.0
        %425 = vmatprep.subr.mxu0 0.0
        %426 = vmatpush2.xpose.msra.mxu0 0.0
        %427 = vmatprep.subr.mxu0 0.0
        %428 = vmatpush2.xpose.msra.mxu0 0.0
        %429 = vmatprep.subr.mxu0 0.0
        %430 = vmatpush2.xpose.msra.mxu0 0.0
        %431 = vmatprep.subr.mxu0 0.0
        %432 = vmatpush2.xpose.msra.mxu0 0.0
        %433 = vmatprep.subr.mxu0 0.0
        %434 = vmatpush2.xpose.msra.mxu0 0.0
        %435 = vmatprep.subr.mxu0 0.0
        %436 = vmatpush2.xpose.msra.mxu0 0.0
        %437 = vmatprep.subr.mxu0 0.0
        %438 = vmatpush2.xpose.msra.mxu0 0.0
        %439 = vmatprep.mubr.f32.mxu0 0.0
        %440 = vmatmul.mubr.f32.gmra.mxu0 %v370
        %v441 = vpop.f32.mrf.mxu0
        %v442 = vadd.f32 0.0, %v441
        %v443 = vpop.f32.mrf.mxu0
        %444 = vdwg.mxu0
        %v445 = vmul.f32 %v442, 0.17677669
        %vm446 = vnez %v355
        %v447 = vsel %vm446, 16843009, 0
        %v448 = vunpack.c.0.s8 %v447
        %vm449 = vcmp.ne.s32.totalorder %v448, 0
        %v450 = vsel %vm449, -1000.0, %v445
        %v451 = vld [vmem:[#allocation2] sm:$0xff]
        %vm452 = vcmask 64512
        %v453 = vsel %vm452, %v450, -inf
        %454 = vmax.xlane.f32.xlu0 %v453
        %v455 = vpop.xlane.xlu0 %454
        %v456 = vmax.f32 %v451, %v455
        %v457 = vsub.f32 %v451, %v456
        %v458 = vmul.f32 %v457, 1.442695
        %v459 = vpow.pop %v458
        %461 = vset.pattern.permute.xlu0 0
        %462 = vperm.xlu0 %461, %v456
        %v463 = vpop.permute.xlu0 %462
        %v465 = vsub.f32 %v450, %v463
        %v466 = vmul.f32 %v465, 1.442695
        %v467 = vpow.pop %v466
        %v468 = vld [vmem:[#allocation3] sm:$0xff]
        %v469 = vmul.f32 %v459, %v468
        %v470 = vsel %vm452, %v467, 0.0
        %471 = vadd.xlane.f32.xlu0 %v470
        %v472 = vpop.xlane.xlu0 %471
        %v473 = vadd.f32 %v469, %v472
        %vm474 = vcmask 7168
        %475 = vst.msk [vmem:[#allocation3] sm:$0xff] %vm474, %v473
        %v476 = vld [vmem:[#allocation4] sm:$0xff]
        %478 = vset.pattern.permute.xlu0 0
        %479 = vperm.xlu0 %478, %v459
        %v480 = vpop.permute.xlu0 %479
        %v482 = vmul.f32 %v480, %v476
        %v484 = vsel %vm452, %v467, 0
        %486 = vmatprep.subr.mxu0 0.0
        %487 = vmatpush1.msra.mxu0 0.0
        %488 = vmatprep.subr.mxu0 0.0
        %489 = vmatpush1.msra.mxu0 0.0
        %490 = vmatprep.subr.mxu0 0.0
        %491 = vmatpush1.msra.mxu0 0.0
        %492 = vmatprep.subr.mxu0 0.0
        %493 = vmatpush1.msra.mxu0 0.0
        %494 = vmatprep.subr.mxu0 0.0
        %495 = vmatpush1.msra.mxu0 0.0
        %496 = vmatprep.subr.mxu0 0.0
        %497 = vmatpush1.msra.mxu0 0.0
        %498 = vmatprep.subr.mxu0 0.0
        %499 = vmatpush1.msra.mxu0 0.0
        %500 = vmatprep.subr.mxu0 0.0
        %501 = vmatpush1.msra.mxu0 0.0
        %502 = vmatprep.subr.mxu0 0.0
        %503 = vmatpush1.msra.mxu0 0.0
        %504 = vmatprep.subr.mxu0 0.0
        %505 = vmatpush1.msra.mxu0 0.0
        %506 = vmatprep.subr.mxu0 0.0
        %507 = vmatpush1.msra.mxu0 0.0
        %508 = vmatprep.subr.mxu0 0.0
        %509 = vmatpush1.msra.mxu0 0.0
        %510 = vmatprep.subr.mxu0 0.0
        %511 = vmatpush1.msra.mxu0 0.0
        %512 = vmatprep.subr.mxu0 0.0
        %513 = vmatpush1.msra.mxu0 0.0
        %514 = vmatprep.subr.mxu0 0.0
        %515 = vmatpush1.msra.mxu0 0.0
        %516 = vmatprep.subr.mxu0 0.0
        %517 = vmatpush1.msra.mxu0 %v367
        %518 = vmatprep.subr.mxu0 0.0
        %519 = vmatpush2.msra.mxu0 0.0
        %520 = vmatprep.subr.mxu0 0.0
        %521 = vmatpush2.msra.mxu0 0.0
        %522 = vmatprep.subr.mxu0 0.0
        %523 = vmatpush2.msra.mxu0 0.0
        %524 = vmatprep.subr.mxu0 0.0
        %525 = vmatpush2.msra.mxu0 0.0
        %526 = vmatprep.subr.mxu0 0.0
        %527 = vmatpush2.msra.mxu0 0.0
        %528 = vmatprep.subr.mxu0 0.0
        %529 = vmatpush2.msra.mxu0 0.0
        %530 = vmatprep.subr.mxu0 0.0
        %531 = vmatpush2.msra.mxu0 0.0
        %532 = vmatprep.subr.mxu0 0.0
        %533 = vmatpush2.msra.mxu0 0.0
        %534 = vmatprep.subr.mxu0 0.0
        %535 = vmatpush2.msra.mxu0 0.0
        %536 = vmatprep.subr.mxu0 0.0
        %537 = vmatpush2.msra.mxu0 0.0
        %538 = vmatprep.subr.mxu0 0.0
        %539 = vmatpush2.msra.mxu0 0.0
        %540 = vmatprep.subr.mxu0 0.0
        %541 = vmatpush2.msra.mxu0 0.0
        %542 = vmatprep.subr.mxu0 0.0
        %543 = vmatpush2.msra.mxu0 0.0
        %544 = vmatprep.subr.mxu0 0.0
        %545 = vmatpush2.msra.mxu0 0.0
        %546 = vmatprep.subr.mxu0 0.0
        %547 = vmatpush2.msra.mxu0 0.0
        %548 = vmatprep.subr.mxu0 0.0
        %549 = vmatpush2.msra.mxu0 0.0
        %550 = vmatprep.mubr.f32.mxu0 0.0
        %551 = vmatmul.mubr.f32.gmra.mxu0 %v484
        %v552 = vpop.f32.mrf.mxu0
        %v553 = vadd.f32 0.0, %v552
        %v554 = vpop.f32.mrf.mxu0
        %555 = vdwg.mxu0
        %v556 = vadd.f32 %v482, %v553
        %557 = vst.msk [vmem:[#allocation4] sm:$0xff] %vm368, %v556
        %558 = vst.msk [vmem:[#allocation2] sm:$0xff] %vm474, %v456
        // Predicated region
        $region53: #{tpu_custom_call.1} parent=35 // pred_check
          %p559 = pneg %p356
        $region54: #{tpu_custom_call.1} parent=35 // pred_check_branch
          %561 = sbr.rel (%p559) target = $region56
        $region55: #{tpu_custom_call.1} parent=35 // pred_region
          %v562 = vld [vmem:[#allocation3] sm:$0xff]
          %v563 = vrcp.pop %v562
          %v564 = vld [vmem:[#allocation4] sm:$0xff]
          %566 = vset.pattern.permute.xlu0 0
          %567 = vperm.xlu0 %566, %v563
          %v568 = vpop.permute.xlu0 %567
          %v570 = vmul.f32 %v564, %v568
          %571 = vst.msk [vmem:[%s342] sm:$0xff] %vm368, %v570
        $region56: #{tpu_custom_call.1} parent=35 // pred_fallthru
          _
        %s572 = sand.u32 %s167, 1
        %s573 = scalar_lea.sflag [#allocation7], %s572
        %s574 = sand.u32 %s167, 1
        %s575 = smul.addr %s574, 8
        %s576 = scalar_lea.vmem [#allocation11], %s575
        // Predicated region
        $region57: #{tpu_custom_call.1} parent=35 // pred_check
          %p577 = pneg %p177
        $region58: #{tpu_custom_call.1} parent=35 // pred_check_branch
          %579 = sbr.rel (%p577) target = $region60
        $region59: #{tpu_custom_call.1} parent=35 // pred_region
          %s581 = ssub.s32 128, 128
          %582 = vsyncadd %s573, %s581
          %s583 = sadd.s32 %s30, %s29
          %s584 = smul.addr %s583, 128
          %s585 = scalar_lea.hbm %s4, %s584
          %s587 = sshll.u32 %s576, 4
          %s588 = int_to_ptr.vmem [resolvable:$true] %s587
          %590 = dma.vmem_to_hbm [thread:$0]  %s588, 128, %s585, %s573
        $region60: #{tpu_custom_call.1} parent=35 // pred_fallthru
          _
      $region36: #{tpu_custom_call.1} parent=5 // pred_fallthru
        _
      %p591 = scmp.le.s32.totalorder 2, %s19
      // Predicated region
      $region61: #{tpu_custom_call.1} parent=5 // pred_check
        %p592 = pneg %p591
      $region62: #{tpu_custom_call.1} parent=5 // pred_check_branch
        %594 = sbr.rel (%p592) target = $region64
      $region63: #{tpu_custom_call.1} parent=5 // pred_region
        %s595 = ssub.s32 %s19, 2
        // Predicated region
        $region65: #{tpu_custom_call.1} parent=63 // pred_check
          %p596 = pneg %p183
        $region66: #{tpu_custom_call.1} parent=63 // pred_check_branch
          %598 = sbr.rel (%p596) target = $region68
        $region67: #{tpu_custom_call.1} parent=63 // pred_region
          %s599 = sand.u32 %s168, 1
          %s600 = scalar_lea.sflag [#allocation7], %s599
          %s601 = sand.u32 %s168, 1
          %s602 = smul.addr %s601, 8
          %s603 = scalar_lea.vmem [#allocation11], %s602
          %604 = dma.done %s600, 128
        $region68: #{tpu_custom_call.1} parent=63 // pred_fallthru
          _
      $region64: #{tpu_custom_call.1} parent=5 // pred_fallthru
        _
    $region6: #{tpu_custom_call.1} parent=1 // loop_footer
      %s23 = sadd.s32 1, %s19
    $region7: #{tpu_custom_call.1} parent=1 // loop_footer_branch
      %18 = sbr.rel target = $region3
    $region8: #{tpu_custom_call.1} parent=1 // loop_exit
      _
    %605 = vsyncpa [#allocation6], 1
    %s606 = scalar_lea.sflag [#allocation6], 1
    %607 = vsyncpa %s606, 1
    %608 = vsyncpa [#allocation9], 1
    %s609 = scalar_lea.sflag [#allocation9], 1
    %610 = vsyncpa %s609, 1
    %611 = vsyncpa [#allocation7], 1
    %s612 = scalar_lea.sflag [#allocation7], 1
    %613 = vsyncpa %s612, 1

</llo_original>
